<compile_context>
chip_gen: v7x
topology: tpu7x:2x2x1
jax: 0.10.0
libtpu: 0.0.40
codegen_flags: <defaults>
</compile_context>

<pallas_src>
import jax
import jax.numpy as jnp
from jax.experimental import pallas as pl
from jax.experimental.pallas import tpu as pltpu


def _round_up(x, m):
    return ((x + m - 1) // m) * m


def mlp_kernel(x_ref, w1_ref, b1_ref, w2_ref, b2_ref, w3_ref, b3_ref, o_ref):
    # Layer 1: Linear + ReLU  (bf16 operands, f32 accumulate)
    h1 = jnp.dot(x_ref[...], w1_ref[...], preferred_element_type=jnp.float32)
    h1 = jnp.maximum(h1 + b1_ref[...], 0.0)

    # Layer 2: Linear + ReLU
    h2 = jnp.dot(h1.astype(jnp.bfloat16), w2_ref[...],
                 preferred_element_type=jnp.float32)
    h2 = jnp.maximum(h2 + b2_ref[...], 0.0)

    # Output layer: Linear + Sigmoid on the (tile_b, output_size) logits only.
    h3 = jnp.dot(h2.astype(jnp.bfloat16), w3_ref[...],
                 preferred_element_type=jnp.float32)
    h3 = h3 + b3_ref[...]
    o_ref[...] = (1.0 / (1.0 + jnp.exp(-h3))).astype(o_ref.dtype)


def neural_network_forward(x, kernel_params, *, tile_b=4096):
    """x: (B, input_size) f32.  kernel_params: bf16-weight params from
    prepare_kernel_params (unpadded).  Returns (B, output_size) f32."""
    w1, b1, w2, b2, w3, b3 = kernel_params
    B, in_size = x.shape
    h1 = w1.shape[1]
    h2 = w2.shape[1]
    out_size = w3.shape[1]

    # Batch tile: large to amortize per-grid-step overhead, multiple of 16
    # (bf16 sublane packing).  Cap so big batches keep >= 2 grid steps, which
    # lets v7x's second TensorCore pick up work via the "parallel" axis.
    B16 = _round_up(B, 16)
    tile_b = min(tile_b, B16)
    if tile_b == B16 and B16 >= 2048:
        tile_b = _round_up(B16 // 2, 16)
    b_pad = _round_up(B, tile_b)

    xb = x.astype(jnp.bfloat16)
    if b_pad != B:
        xb = jnp.pad(xb, ((0, b_pad - B), (0, 0)))

    grid = (b_pad // tile_b,)

    flops = 2 * b_pad * (in_size * h1 + h1 * h2 + h2 * out_size)
    bytes_accessed = (
        xb.size * 2                                   # x (bf16)
        + (w1.size + w2.size + w3.size) * 2           # weights (bf16)
        + (b1.size + b2.size + b3.size) * 4           # biases (f32)
        + b_pad * out_size * 4                        # output (f32, unpadded)
    )
    cost = pl.CostEstimate(flops=flops,
                           transcendentals=b_pad * out_size,
                           bytes_accessed=bytes_accessed)

    out = pl.pallas_call(
        mlp_kernel,
        out_shape=jax.ShapeDtypeStruct((b_pad, out_size), jnp.float32),
        grid=grid,
        in_specs=[
            pl.BlockSpec((tile_b, in_size), lambda i: (i, 0)),   # x tile
            pl.BlockSpec((in_size, h1), lambda i: (0, 0)),       # w1 (resident)
            pl.BlockSpec((1, h1), lambda i: (0, 0)),             # b1 (resident)
            pl.BlockSpec((h1, h2), lambda i: (0, 0)),            # w2 (resident)
            pl.BlockSpec((1, h2), lambda i: (0, 0)),             # b2 (resident)
            pl.BlockSpec((h2, out_size), lambda i: (0, 0)),      # w3 (resident)
            pl.BlockSpec((1, out_size), lambda i: (0, 0)),       # b3 (resident)
        ],
        out_specs=pl.BlockSpec((tile_b, out_size), lambda i: (i, 0)),
        compiler_params=pltpu.CompilerParams(
            dimension_semantics=("parallel",)),       # megacore sharding on v7x
        cost_estimate=cost,
    )(xb, w1, b1, w2, b2, w3, b3)

    return out[:B, :]


def init_params(key, input_size, hidden_size=64, output_size=1):
    """Master f32 params matching PyTorch nn.Linear init, stored (in, out)."""
    k1, k2, k3, k4, k5, k6 = jax.random.split(key, 6)
    h2 = hidden_size // 2

    def uinit(k, shape, fan_in):
        bound = 1.0 / jnp.sqrt(fan_in)
        return jax.random.uniform(k, shape, jnp.float32, -bound, bound)

    w1 = uinit(k1, (input_size, hidden_size), input_size)
    b1 = uinit(k2, (1, hidden_size), input_size)
    w2 = uinit(k3, (hidden_size, h2), hidden_size)
    b2 = uinit(k4, (1, h2), hidden_size)
    w3 = uinit(k5, (h2, output_size), h2)
    b3 = uinit(k6, (1, output_size), h2)
    return (w1, b1, w2, b2, w3, b3)


def prepare_kernel_params(params):
    """Kernel-side params: weights cast to bf16 for the MXU, biases stay f32.
    No lane padding — full-dim BlockSpecs are legal and keep HBM traffic and
    MXU/VPU/EUP work minimal."""
    w1, b1, w2, b2, w3, b3 = params
    return (w1.astype(jnp.bfloat16), b1,
            w2.astype(jnp.bfloat16), b2,
            w3.astype(jnp.bfloat16), b3)


def reference_forward(x, params):
    """Pure f32 reference of the PyTorch forward."""
    w1, b1, w2, b2, w3, b3 = params
    h1 = jnp.maximum(x @ w1 + b1, 0.0)
    h2 = jnp.maximum(h1 @ w2 + b2, 0.0)
    return jax.nn.sigmoid(h2 @ w3 + b3)


if __name__ == "__main__":
    key = jax.random.PRNGKey(0)
    kx, kp = jax.random.split(key)

    batch = 8
    input_size = 32
    hidden_size = 64
    output_size = 1

    x = jax.random.normal(kx, (batch, input_size), jnp.float32)
    params = init_params(kp, input_size, hidden_size, output_size)
    kparams = prepare_kernel_params(params)

    out = neural_network_forward(x, kparams)
    out = jax.block_until_ready(out)

    ref = reference_forward(x, params)
    assert out.shape == (batch, output_size)
    # bf16 MXU operands vs f32 reference: tolerance covers bf16 quantization
    # of x / weights.
    assert jnp.allclose(out, ref, atol=2e-2, rtol=2e-2), (
        f"max abs err {jnp.max(jnp.abs(out - ref))}")

    print("KERNEL_OK")
</pallas_src>

<mosaic_0001>
module attributes {stable_mosaic.version = 11 : i64} {
  func.func @mlp_kernel(%arg0: i32, %arg1: memref<16x32xbf16, #tpu.memory_space<vmem>>, %arg2: memref<32x64xbf16, #tpu.memory_space<vmem>>, %arg3: memref<1x64xf32, #tpu.memory_space<vmem>>, %arg4: memref<64x32xbf16, #tpu.memory_space<vmem>>, %arg5: memref<1x32xf32, #tpu.memory_space<vmem>>, %arg6: memref<32x1xbf16, #tpu.memory_space<vmem>>, %arg7: memref<1x1xf32, #tpu.memory_space<vmem>>, %arg8: memref<16x1xf32, #tpu.memory_space<vmem>>) attributes {dimension_semantics = [#tpu.dimension_semantics<parallel>], iteration_bounds = array<i64: 1>, scalar_prefetch = 0 : i64, scratch_operands = 0 : i64, tpu.core_type = #tpu.core_type<tc>, window_params = [{transform_indices = @transform_0, window_bounds = array<i64: 16, 32>}, {pipeline_mode = #tpu.pipeline_mode<synchronous>, transform_indices = @transform_1, window_bounds = array<i64: 32, 64>}, {pipeline_mode = #tpu.pipeline_mode<synchronous>, transform_indices = @transform_2, window_bounds = array<i64: 1, 64>}, {pipeline_mode = #tpu.pipeline_mode<synchronous>, transform_indices = @transform_3, window_bounds = array<i64: 64, 32>}, {pipeline_mode = #tpu.pipeline_mode<synchronous>, transform_indices = @transform_4, window_bounds = array<i64: 1, 32>}, {pipeline_mode = #tpu.pipeline_mode<synchronous>, transform_indices = @transform_5, window_bounds = array<i64: 32, 1>}, {pipeline_mode = #tpu.pipeline_mode<synchronous>, transform_indices = @transform_6, window_bounds = array<i64: 1, 1>}, {transform_indices = @transform_7, window_bounds = array<i64: 16, 1>}]} {
    %c0 = arith.constant 0 : index
    %c0_0 = arith.constant 0 : index
    %0 = vector.load %arg1[%c0, %c0_0] : memref<16x32xbf16, #tpu.memory_space<vmem>>, vector<16x32xbf16>
    %c0_1 = arith.constant 0 : index
    %c0_2 = arith.constant 0 : index
    %1 = vector.load %arg2[%c0_1, %c0_2] : memref<32x64xbf16, #tpu.memory_space<vmem>>, vector<32x64xbf16>
    %cst = arith.constant dense<0.000000e+00> : vector<16x64xf32>
    %2 = tpu.matmul %0, %1, %cst {dimension_numbers = #tpu.dot_dimension_numbers<[1], [0], [0], [1], [0, 0, 1, 1], [], []>} : vector<16x32xbf16>, vector<32x64xbf16>, vector<16x64xf32> -> vector<16x64xf32>
    %c0_3 = arith.constant 0 : index
    %c0_4 = arith.constant 0 : index
    %3 = vector.load %arg3[%c0_3, %c0_4] : memref<1x64xf32, #tpu.memory_space<vmem>>, vector<1x64xf32>
    %4 = vector.broadcast %3 : vector<1x64xf32> to vector<16x64xf32>
    %5 = arith.addf %2, %4 : vector<16x64xf32>
    %cst_5 = arith.constant 0.000000e+00 : f32
    %6 = vector.broadcast %cst_5 : f32 to vector<16x64xf32>
    %7 = arith.maximumf %5, %6 : vector<16x64xf32>
    %8 = arith.truncf %7 : vector<16x64xf32> to vector<16x64xbf16>
    %c0_6 = arith.constant 0 : index
    %c0_7 = arith.constant 0 : index
    %9 = vector.load %arg4[%c0_6, %c0_7] : memref<64x32xbf16, #tpu.memory_space<vmem>>, vector<64x32xbf16>
    %cst_8 = arith.constant dense<0.000000e+00> : vector<16x32xf32>
    %10 = tpu.matmul %8, %9, %cst_8 {dimension_numbers = #tpu.dot_dimension_numbers<[1], [0], [0], [1], [0, 0, 1, 1], [], []>} : vector<16x64xbf16>, vector<64x32xbf16>, vector<16x32xf32> -> vector<16x32xf32>
    %c0_9 = arith.constant 0 : index
    %c0_10 = arith.constant 0 : index
    %11 = vector.load %arg5[%c0_9, %c0_10] : memref<1x32xf32, #tpu.memory_space<vmem>>, vector<1x32xf32>
    %12 = vector.broadcast %11 : vector<1x32xf32> to vector<16x32xf32>
    %13 = arith.addf %10, %12 : vector<16x32xf32>
    %cst_11 = arith.constant 0.000000e+00 : f32
    %14 = vector.broadcast %cst_11 : f32 to vector<16x32xf32>
    %15 = arith.maximumf %13, %14 : vector<16x32xf32>
    %16 = arith.truncf %15 : vector<16x32xf32> to vector<16x32xbf16>
    %c0_12 = arith.constant 0 : index
    %c0_13 = arith.constant 0 : index
    %17 = vector.load %arg6[%c0_12, %c0_13] : memref<32x1xbf16, #tpu.memory_space<vmem>>, vector<32x1xbf16>
    %cst_14 = arith.constant dense<0.000000e+00> : vector<16x1xf32>
    %18 = tpu.matmul %16, %17, %cst_14 {dimension_numbers = #tpu.dot_dimension_numbers<[1], [0], [0], [1], [0, 0, 1, 1], [], []>} : vector<16x32xbf16>, vector<32x1xbf16>, vector<16x1xf32> -> vector<16x1xf32>
    %c0_15 = arith.constant 0 : index
    %c0_16 = arith.constant 0 : index
    %19 = vector.load %arg7[%c0_15, %c0_16] : memref<1x1xf32, #tpu.memory_space<vmem>>, vector<1x1xf32>
    %20 = vector.broadcast %19 : vector<1x1xf32> to vector<16x1xf32>
    %21 = arith.addf %18, %20 : vector<16x1xf32>
    %cst_17 = arith.constant 0.000000e+00 : f32
    %22 = vector.broadcast %cst_17 : f32 to vector<16x1xf32>
    %23 = arith.subf %22, %21 : vector<16x1xf32>
    %24 = math.exp %23 : vector<16x1xf32>
    %cst_18 = arith.constant 1.000000e+00 : f32
    %25 = vector.broadcast %cst_18 : f32 to vector<16x1xf32>
    %26 = arith.addf %25, %24 : vector<16x1xf32>
    %cst_19 = arith.constant 1.000000e+00 : f32
    %27 = vector.broadcast %cst_19 : f32 to vector<16x1xf32>
    %28 = arith.divf %27, %26 : vector<16x1xf32>
    %c0_20 = arith.constant 0 : index
    %c0_21 = arith.constant 0 : index
    %29 = vector.load %arg8[%c0_20, %c0_21] : memref<16x1xf32, #tpu.memory_space<vmem>>, vector<16x1xf32>
    tpu.vector_store %arg8[%c0_20, %c0_21], %28 {strides = array<i32>} : memref<16x1xf32, #tpu.memory_space<vmem>>, vector<16x1xf32>,
    return
  }
  func.func @transform_0(%arg0: i32) -> (i32, i32) {
    %c0_i32 = arith.constant 0 : i32
    %c0_i32_0 = arith.constant 0 : i32
    return %arg0, %c0_i32 : i32, i32
  }
  func.func @transform_1(%arg0: i32) -> (i32, i32) {
    %c0_i32 = arith.constant 0 : i32
    %c0_i32_0 = arith.constant 0 : i32
    %c0_i32_1 = arith.constant 0 : i32
    return %c0_i32, %c0_i32_0 : i32, i32
  }
  func.func @transform_2(%arg0: i32) -> (i32, i32) {
    %c0_i32 = arith.constant 0 : i32
    %c0_i32_0 = arith.constant 0 : i32
    %c0_i32_1 = arith.constant 0 : i32
    return %c0_i32, %c0_i32_0 : i32, i32
  }
  func.func @transform_3(%arg0: i32) -> (i32, i32) {
    %c0_i32 = arith.constant 0 : i32
    %c0_i32_0 = arith.constant 0 : i32
    %c0_i32_1 = arith.constant 0 : i32
    return %c0_i32, %c0_i32_0 : i32, i32
  }
  func.func @transform_4(%arg0: i32) -> (i32, i32) {
    %c0_i32 = arith.constant 0 : i32
    %c0_i32_0 = arith.constant 0 : i32
    %c0_i32_1 = arith.constant 0 : i32
    return %c0_i32, %c0_i32_0 : i32, i32
  }
  func.func @transform_5(%arg0: i32) -> (i32, i32) {
    %c0_i32 = arith.constant 0 : i32
    %c0_i32_0 = arith.constant 0 : i32
    %c0_i32_1 = arith.constant 0 : i32
    return %c0_i32, %c0_i32_0 : i32, i32
  }
  func.func @transform_6(%arg0: i32) -> (i32, i32) {
    %c0_i32 = arith.constant 0 : i32
    %c0_i32_0 = arith.constant 0 : i32
    %c0_i32_1 = arith.constant 0 : i32
    return %c0_i32, %c0_i32_0 : i32, i32
  }
  func.func @transform_7(%arg0: i32) -> (i32, i32) {
    %c0_i32 = arith.constant 0 : i32
    %c0_i32_0 = arith.constant 0 : i32
    return %arg0, %c0_i32 : i32, i32
  }
}

</mosaic_0001>

<llo_original>
// kernel: tpu_custom_call.1
$region0: #{tpu_custom_call.1}
  #allocation0 [shape = 'u32[]', space=smem, size = 0x4, offset = 0x4, fixed_abs, tag = 'smem constant byte address 0x4 - core index']
  #allocation1 [shape = 'u32[144,128]{1,0:T(1,128)}', space=vmem, size = 0x12000, scoped, tag = 'internal scratch']
  #allocation2 [shape = 'f32[1,1]{1,0:T(1,128)S(1)}', space=vmem, size = 0x200, scoped, tag = 'scoped memory for tpu_custom_call.1']
  %s0 = inlined_call_operand.vmem [shape: bf16[16,32], index: 0, kind: input, shape index: {}]
  %s1 = inlined_call_operand.vmem [shape: bf16[32,64], index: 1, kind: input, shape index: {}]
  %s2 = inlined_call_operand.vmem [shape: f32[1,64], index: 2, kind: input, shape index: {}]
  %s3 = inlined_call_operand.vmem [shape: bf16[64,32], index: 3, kind: input, shape index: {}]
  %s4 = inlined_call_operand.vmem [shape: f32[1,32], index: 4, kind: input, shape index: {}]
  %s5 = inlined_call_operand.vmem [shape: bf16[32,1], index: 5, kind: input, shape index: {}]
  %s6 = inlined_call_operand.<no memory space> [shape: f32[1,1], index: 6, kind: input, shape index: {}]
  %s7 = inlined_call_operand.vmem [shape: f32[16,1], index: 7, kind: output, shape index: {}]
  %s8 = sld [smem:[#allocation0]]
  $region38: #{tpu_custom_call.1} parent=0
    _
  %s10 = ssub.s32 1, %s8
  %s11 = scalar_select 0, %s10, %s8
  %v12 = vstv %s6
  %13 = vst [vmem:[#allocation2] sm:$0x1] %v12
  // Predicated region
  $region2: #{tpu_custom_call.1} parent=0 // pred_check
    _
  $region3: #{tpu_custom_call.1} parent=0 // pred_check_branch
    %15 = sbr.rel (0) target = $region5
  $region4: #{tpu_custom_call.1} parent=0 // pred_region
    _
  $region5: #{tpu_custom_call.1} parent=0 // pred_fallthru
    _
  // Predicated region
  $region6: #{tpu_custom_call.1} parent=0 // pred_check
    _
  $region7: #{tpu_custom_call.1} parent=0 // pred_check_branch
    %17 = sbr.rel (0) target = $region9
  $region8: #{tpu_custom_call.1} parent=0 // pred_region
    _
  $region9: #{tpu_custom_call.1} parent=0 // pred_fallthru
    _
  // Predicated region
  $region10: #{tpu_custom_call.1} parent=0 // pred_check
    _
  $region11: #{tpu_custom_call.1} parent=0 // pred_check_branch
    %19 = sbr.rel (0) target = $region13
  $region12: #{tpu_custom_call.1} parent=0 // pred_region
    _
  $region13: #{tpu_custom_call.1} parent=0 // pred_fallthru
    _
  // Predicated region
  $region14: #{tpu_custom_call.1} parent=0 // pred_check
    _
  $region15: #{tpu_custom_call.1} parent=0 // pred_check_branch
    %21 = sbr.rel (0) target = $region17
  $region16: #{tpu_custom_call.1} parent=0 // pred_region
    _
  $region17: #{tpu_custom_call.1} parent=0 // pred_fallthru
    _
  // Predicated region
  $region18: #{tpu_custom_call.1} parent=0 // pred_check
    _
  $region19: #{tpu_custom_call.1} parent=0 // pred_check_branch
    %23 = sbr.rel (0) target = $region21
  $region20: #{tpu_custom_call.1} parent=0 // pred_region
    _
  $region21: #{tpu_custom_call.1} parent=0 // pred_fallthru
    _
  // Predicated region
  $region22: #{tpu_custom_call.1} parent=0 // pred_check
    _
  $region23: #{tpu_custom_call.1} parent=0 // pred_check_branch
    %25 = sbr.rel (0) target = $region25
  $region24: #{tpu_custom_call.1} parent=0 // pred_region
    _
  $region25: #{tpu_custom_call.1} parent=0 // pred_fallthru
    _
  // Predicated region
  $region26: #{tpu_custom_call.1} parent=0 // pred_check
    _
  $region27: #{tpu_custom_call.1} parent=0 // pred_check_branch
    %27 = sbr.rel (0) target = $region29
  $region28: #{tpu_custom_call.1} parent=0 // pred_region
    _
  $region29: #{tpu_custom_call.1} parent=0 // pred_fallthru
    _
  %v29 = vld [vmem:[%s0] sm:$0xf]
  %v30 = vld [vmem:[%s0 + $0x4] sm:$0xf]
  %v31 = vld [vmem:[%s1] sm:$0xf]
  %v32 = vld [vmem:[%s1 + $0x4] sm:$0xf]
  %v33 = vld [vmem:[%s1 + $0x8] sm:$0xf]
  %v34 = vld [vmem:[%s1 + $0xc] sm:$0xf]
  %v35 = vld [vmem:[%s2] sm:$0x1]
  %v37 = vlaneseq
  %v38 = vshrl.u32 %v37, 7
  %v39 = vsub.s32 0, %v38
  %v40 = vrot.slane %v35, %v39
  %v44 = vunpack.c.l.b16 %v29
  %v45 = vunpack.c.l.b16 %v30
  %v46 = vpack.c.b16 %v45, %v44
  %v51 = vunpack.c.l.b16 %v31
  %v52 = vunpack.c.l.b16 %v32
  %v53 = vunpack.c.l.b16 %v33
  %v54 = vunpack.c.l.b16 %v34
  %v55 = vpack.c.b16 %v52, %v51
  %v56 = vpack.c.b16 %v54, %v53
  %vm59 = vcmask 261120
  %v61 = vsel %vm59, %v46, 0
  %63 = vmatprep.subr.bf16.mxu0 0
  %64 = vmatpush1.bf16.msra.mxu0 %v55
  %65 = vmatprep.subr.bf16.mxu0 0
  %66 = vmatpush1.bf16.msra.mxu0 %v56
  %67 = vmatprep.subr.bf16.mxu0 0
  %68 = vmatpush1.bf16.msra.mxu0 0
  %69 = vmatprep.subr.bf16.mxu0 0
  %70 = vmatpush1.bf16.msra.mxu0 0
  %71 = vmatprep.subr.bf16.mxu0 0
  %72 = vmatpush1.bf16.msra.mxu0 0
  %73 = vmatprep.subr.bf16.mxu0 0
  %74 = vmatpush1.bf16.msra.mxu0 0
  %75 = vmatprep.subr.bf16.mxu0 0
  %76 = vmatpush1.bf16.msra.mxu0 0
  %77 = vmatprep.subr.bf16.mxu0 0
  %78 = vmatpush1.bf16.msra.mxu0 0
  %79 = vmatprep.subr.bf16.mxu0 0
  %80 = vmatpush1.bf16.msra.mxu0 0
  %81 = vmatprep.subr.bf16.mxu0 0
  %82 = vmatpush1.bf16.msra.mxu0 0
  %83 = vmatprep.subr.bf16.mxu0 0
  %84 = vmatpush1.bf16.msra.mxu0 0
  %85 = vmatprep.subr.bf16.mxu0 0
  %86 = vmatpush1.bf16.msra.mxu0 0
  %87 = vmatprep.subr.bf16.mxu0 0
  %88 = vmatpush1.bf16.msra.mxu0 0
  %89 = vmatprep.subr.bf16.mxu0 0
  %90 = vmatpush1.bf16.msra.mxu0 0
  %91 = vmatprep.subr.bf16.mxu0 0
  %92 = vmatpush1.bf16.msra.mxu0 0
  %93 = vmatprep.subr.bf16.mxu0 0
  %94 = vmatpush1.bf16.msra.mxu0 0
  %95 = vmatprep.mubr.bf16.mxu0 0
  %96 = vmatmul.mubr.bf16.gmra.mrb[0].mxu0 %v61
  %v97 = vpop.f32.mrb[0].mxu0
  %v98 = vadd.f32 %v40, %v97
  %v99 = vpop.f32.mrb[0].mxu0
  %v100 = vpop.f32.mrb[0].mxu0
  %v101 = vadd.f32 %v40, %v100
  %v102 = vpop.f32.mrb[0].mxu0
  %103 = vdwg.mxu0
  %v104 = vmax.f32 %v98, 0.0
  %v105 = vmax.f32 %v101, 0.0
  %v106 = vpack.c.bf16 %v105, %v104
  %v107 = vld [vmem:[%s3] sm:$0xf]
  %v108 = vld [vmem:[%s3 + $0x4] sm:$0xf]
  %v109 = vld [vmem:[%s3 + $0x8] sm:$0xf]
  %v110 = vld [vmem:[%s3 + $0xc] sm:$0xf]
  %v111 = vld [vmem:[%s3 + $0x10] sm:$0xf]
  %v112 = vld [vmem:[%s3 + $0x14] sm:$0xf]
  %v113 = vld [vmem:[%s3 + $0x18] sm:$0xf]
  %v114 = vld [vmem:[%s3 + $0x1c] sm:$0xf]
  %v115 = vld [vmem:[%s4] sm:$0x1]
  %v117 = vlaneseq
  %v118 = vshrl.u32 %v117, 7
  %v119 = vsub.s32 0, %v118
  %v120 = vrot.slane %v115, %v119
  %v130 = vunpack.c.l.b16 %v107
  %v131 = vunpack.c.l.b16 %v108
  %v132 = vunpack.c.l.b16 %v109
  %v133 = vunpack.c.l.b16 %v110
  %v134 = vunpack.c.l.b16 %v111
  %v135 = vunpack.c.l.b16 %v112
  %v136 = vunpack.c.l.b16 %v113
  %v137 = vunpack.c.l.b16 %v114
  %v138 = vpack.c.b16 %v131, %v130
  %v139 = vpack.c.b16 %v133, %v132
  %v140 = vpack.c.b16 %v135, %v134
  %v141 = vpack.c.b16 %v137, %v136
  %vm146 = vcmask 523264
  %v148 = vsel %vm146, %v106, 0
  %150 = vmatprep.subr.bf16.mxu0 0
  %151 = vmatpush1.bf16.msra.mxu0 %v138
  %152 = vmatprep.subr.bf16.mxu0 0
  %153 = vmatpush1.bf16.msra.mxu0 %v139
  %154 = vmatprep.subr.bf16.mxu0 0
  %155 = vmatpush1.bf16.msra.mxu0 %v140
  %156 = vmatprep.subr.bf16.mxu0 0
  %157 = vmatpush1.bf16.msra.mxu0 %v141
  %158 = vmatprep.subr.bf16.mxu0 0
  %159 = vmatpush1.bf16.msra.mxu0 0
  %160 = vmatprep.subr.bf16.mxu0 0
  %161 = vmatpush1.bf16.msra.mxu0 0
  %162 = vmatprep.subr.bf16.mxu0 0
  %163 = vmatpush1.bf16.msra.mxu0 0
  %164 = vmatprep.subr.bf16.mxu0 0
  %165 = vmatpush1.bf16.msra.mxu0 0
  %166 = vmatprep.subr.bf16.mxu0 0
  %167 = vmatpush1.bf16.msra.mxu0 0
  %168 = vmatprep.subr.bf16.mxu0 0
  %169 = vmatpush1.bf16.msra.mxu0 0
  %170 = vmatprep.subr.bf16.mxu0 0
  %171 = vmatpush1.bf16.msra.mxu0 0
  %172 = vmatprep.subr.bf16.mxu0 0
  %173 = vmatpush1.bf16.msra.mxu0 0
  %174 = vmatprep.subr.bf16.mxu0 0
  %175 = vmatpush1.bf16.msra.mxu0 0
  %176 = vmatprep.subr.bf16.mxu0 0
  %177 = vmatpush1.bf16.msra.mxu0 0
  %178 = vmatprep.subr.bf16.mxu0 0
  %179 = vmatpush1.bf16.msra.mxu0 0
  %180 = vmatprep.subr.bf16.mxu0 0
  %181 = vmatpush1.bf16.msra.mxu0 0
  %182 = vmatprep.mubr.bf16.mxu0 0
  %183 = vmatmul.mubr.bf16.gmra.mrb[0].mxu0 %v148
  %v184 = vpop.f32.mrb[0].mxu0
  %v185 = vadd.f32 %v120, %v184
  %v186 = vpop.f32.mrb[0].mxu0
  %v187 = vpop.f32.mrb[0].mxu0
  %v188 = vadd.f32 %v120, %v187
  %v189 = vpop.f32.mrb[0].mxu0
  %190 = vdwg.mxu0
  %v191 = vmax.f32 %v185, 0.0
  %v192 = vmax.f32 %v188, 0.0
  %v193 = vpack.c.bf16 %v192, %v191
  %v194 = vld [vmem:[%s5] sm:$0xf]
  %v195 = vld [vmem:[%s5 + $0x4] sm:$0xf]
  %v196 = vld [vmem:[%s5 + $0x8] sm:$0xf]
  %v197 = vld [vmem:[%s5 + $0xc] sm:$0xf]
  %v198 = vld [vmem:[#allocation2] sm:$0x1]
  %v200 = vlaneseq
  %v201 = vshrl.u32 %v200, 7
  %v202 = vsub.s32 0, %v201
  %v203 = vrot.slane %v198, %v202
  %v209 = vunpack.c.l.b16 %v194
  %v210 = vunpack.c.l.b16 %v195
  %v211 = vunpack.c.l.b16 %v196
  %v212 = vunpack.c.l.b16 %v197
  %v213 = vpack.c.b16 %v210, %v209
  %v214 = vpack.c.b16 %v212, %v211
  %v218 = vsel %vm59, %v193, 0
  %220 = vmatprep.subr.bf16.mxu0 0
  %221 = vmatpush1.bf16.msra.mxu0 %v213
  %222 = vmatprep.subr.bf16.mxu0 0
  %223 = vmatpush1.bf16.msra.mxu0 %v214
  %224 = vmatprep.subr.bf16.mxu0 0
  %225 = vmatpush1.bf16.msra.mxu0 0
  %226 = vmatprep.subr.bf16.mxu0 0
  %227 = vmatpush1.bf16.msra.mxu0 0
  %228 = vmatprep.subr.bf16.mxu0 0
  %229 = vmatpush1.bf16.msra.mxu0 0
  %230 = vmatprep.subr.bf16.mxu0 0
  %231 = vmatpush1.bf16.msra.mxu0 0
  %232 = vmatprep.subr.bf16.mxu0 0
  %233 = vmatpush1.bf16.msra.mxu0 0
  %234 = vmatprep.subr.bf16.mxu0 0
  %235 = vmatpush1.bf16.msra.mxu0 0
  %236 = vmatprep.subr.bf16.mxu0 0
  %237 = vmatpush1.bf16.msra.mxu0 0
  %238 = vmatprep.subr.bf16.mxu0 0
  %239 = vmatpush1.bf16.msra.mxu0 0
  %240 = vmatprep.subr.bf16.mxu0 0
  %241 = vmatpush1.bf16.msra.mxu0 0
  %242 = vmatprep.subr.bf16.mxu0 0
  %243 = vmatpush1.bf16.msra.mxu0 0
  %244 = vmatprep.subr.bf16.mxu0 0
  %245 = vmatpush1.bf16.msra.mxu0 0
  %246 = vmatprep.subr.bf16.mxu0 0
  %247 = vmatpush1.bf16.msra.mxu0 0
  %248 = vmatprep.subr.bf16.mxu0 0
  %249 = vmatpush1.bf16.msra.mxu0 0
  %250 = vmatprep.subr.bf16.mxu0 0
  %251 = vmatpush1.bf16.msra.mxu0 0
  %252 = vmatprep.mubr.bf16.mxu0 0
  %253 = vmatmul.mubr.bf16.gmra.mrb[0].mxu0 %v218
  %v254 = vpop.f32.mrb[0].mxu0
  %v255 = vadd.f32 %v203, %v254
  %v256 = vpop.f32.mrb[0].mxu0
  %v257 = vpop.f32.mrb[0].mxu0
  %v258 = vadd.f32 %v203, %v257
  %v259 = vpop.f32.mrb[0].mxu0
  %260 = vdwg.mxu0
  %v261 = vsub.f32 0.0, %v255
  %v262 = vsub.f32 0.0, %v258
  %v263 = vmul.f32 %v261, 1.442695
  %v264 = vpow.pop %v263
  %v265 = vmul.f32 %v262, 1.442695
  %v266 = vpow.pop %v265
  %v267 = vadd.f32 %v264, 1.0
  %v268 = vadd.f32 %v266, 1.0
  %v269 = vrcp.pop %v267
  %v270 = vmul.f32 1.0, %v269
  %v271 = vrcp.pop %v268
  %v272 = vmul.f32 1.0, %v271
  %vm273 = vcmask 7168
  %274 = vst.msk [vmem:[%s7] sm:$0xff] %vm273, %v270
  %275 = vst.msk [vmem:[%s7 + $0x8] sm:$0xff] %vm273, %v272
  // Predicated region
  $region30: #{tpu_custom_call.1} parent=0 // pred_check
    _
  $region31: #{tpu_custom_call.1} parent=0 // pred_check_branch
    %277 = sbr.rel (0) target = $region33
  $region32: #{tpu_custom_call.1} parent=0 // pred_region
    _
  $region33: #{tpu_custom_call.1} parent=0 // pred_fallthru
    _
  // Predicated region
  $region34: #{tpu_custom_call.1} parent=0 // pred_check
    _
  $region35: #{tpu_custom_call.1} parent=0 // pred_check_branch
    %279 = sbr.rel (0) target = $region37
  $region36: #{tpu_custom_call.1} parent=0 // pred_region
    _
  $region37: #{tpu_custom_call.1} parent=0 // pred_fallthru
    _

</llo_original>
